<compile_context>
chip_gen: v5e
topology: v5e:2x2
jax: 0.10.0
libtpu: 0.0.40
codegen_flags: <defaults>
</compile_context>

<pallas_src>
import functools

import jax
import jax.numpy as jnp
import numpy as np
from jax.experimental import pallas as pl
from jax.experimental.pallas import tpu as pltpu

EPS = 1e-5


def _round_up(x, m):
    return ((x + m - 1) // m) * m


# ----------------------------------------------------------------------------
# Pallas kernel: K-tiled GEMM (f32 accumulator) + folded-BN affine
#                + fused residual (identity add OR 1x1-conv+BN) + ReLU
# ----------------------------------------------------------------------------
def _gemm_bn_kernel(*refs, apply_relu: bool, skip_mode: str):
    if skip_mode == "none":
        a_ref, b_ref, s_ref, bia_ref, o_ref, acc_ref = refs
    elif skip_mode == "add":
        a_ref, b_ref, s_ref, bia_ref, r_ref, o_ref, acc_ref = refs
    else:  # "conv": fused 1x1-conv + BN skip branch
        (a_ref, b_ref, s_ref, bia_ref,
         ra_ref, rb_ref, rs_ref, rbia_ref, o_ref, acc_ref) = refs

    k = pl.program_id(2)

    @pl.when(k == 0)
    def _():
        acc_ref[...] = jnp.zeros_like(acc_ref)

    # bf16 x bf16 -> f32 accumulation on the MXU
    acc_ref[...] += jnp.dot(a_ref[...], b_ref[...],
                            preferred_element_type=jnp.float32)

    @pl.when(k == pl.num_programs(2) - 1)
    def _():
        y = acc_ref[...] * s_ref[...] + bia_ref[...]        # folded BatchNorm (f32 epilogue)
        if skip_mode == "add":
            y = y + r_ref[...].astype(jnp.float32)          # identity residual
        elif skip_mode == "conv":
            ry = jnp.dot(ra_ref[...], rb_ref[...],          # fused 1x1 conv skip
                         preferred_element_type=jnp.float32)
            y = y + ry * rs_ref[...] + rbia_ref[...]        # folded bn3
        if apply_relu:
            y = jnp.maximum(y, 0.0)
        o_ref[...] = y.astype(o_ref.dtype)


def fused_gemm_bn(a, b, scale, bias, *, residual=None, skip=None, relu=False,
                  out_dtype=jnp.float32, tm=512, tn=256, tk=512):
    """out = [relu]((a @ b) * scale + bias [+ residual | + (ra@rb)*rs + rbias]).

    a:(M,K), b:(K,N).  GEMM operands are cast to bf16; accumulation is f32.
    M/N/K are zero-padded to tile multiples (N to a multiple of 128 so output
    stores are lane-dense); padding is sliced off on return.
    """
    assert residual is None or skip is None
    M, K = a.shape
    _, N = b.shape

    tm = min(tm, _round_up(M, 128))
    tn = min(tn, _round_up(N, 128))
    tk = min(tk, _round_up(K, 128))
    Mp, Np, Kp = _round_up(M, tm), _round_up(N, tn), _round_up(K, tk)

    def pad2(x, r, c):
        return jnp.pad(x, ((0, r - x.shape[0]), (0, c - x.shape[1])))

    a = pad2(a.astype(jnp.bfloat16), Mp, Kp)
    b = pad2(b.astype(jnp.bfloat16), Kp, Np)
    scale2 = pad2(scale.reshape(1, N).astype(jnp.float32), 1, Np)
    bias2 = pad2(bias.reshape(1, N).astype(jnp.float32), 1, Np)

    in_specs = [
        pl.BlockSpec((tm, tk), lambda i, j, k: (i, k)),   # A (im2col patches)
        pl.BlockSpec((tk, tn), lambda i, j, k: (k, j)),   # B (weights)
        pl.BlockSpec((1, tn), lambda i, j, k: (0, j)),    # bn scale
        pl.BlockSpec((1, tn), lambda i, j, k: (0, j)),    # bn bias
    ]
    inputs = [a, b, scale2, bias2]
    skip_mode = "none"
    ksk_p = 0

    if residual is not None:                 # identity skip: plain tile add
        skip_mode = "add"
        inputs.append(pad2(residual.astype(jnp.bfloat16), Mp, Np))
        in_specs.append(pl.BlockSpec((tm, tn), lambda i, j, k: (i, j)))
    elif skip is not None:                   # 1x1-conv + BN skip fused in-kernel
        skip_mode = "conv"
        ra, rb, rs, rbia = skip
        ksk_p = _round_up(ra.shape[1], 128)
        inputs += [
            pad2(ra.astype(jnp.bfloat16), Mp, ksk_p),
            pad2(rb.astype(jnp.bfloat16), ksk_p, Np),
            pad2(rs.reshape(1, -1).astype(jnp.float32), 1, Np),
            pad2(rbia.reshape(1, -1).astype(jnp.float32), 1, Np),
        ]
        in_specs += [
            pl.BlockSpec((tm, ksk_p), lambda i, j, k: (i, 0)),   # loaded once per M tile
            pl.BlockSpec((ksk_p, tn), lambda i, j, k: (0, j)),
            pl.BlockSpec((1, tn), lambda i, j, k: (0, j)),
            pl.BlockSpec((1, tn), lambda i, j, k: (0, j)),
        ]

    # VMEM budget: double-buffered tiles + accumulator, capped below v7x's 64 MiB.
    est = 2 * (tm * tk + tk * tn) * 2 + 2 * tm * tn * 4 + tm * tn * 4 + 4 * tn * 4 * 2
    if skip_mode == "add":
        est += 2 * tm * tn * 2
    elif skip_mode == "conv":
        est += 2 * (tm * ksk_p + ksk_p * tn) * 2 + 4 * tn * 4 * 2
    vmem_limit = int(min(64 * 1024 * 1024, max(32 * 1024 * 1024, 2 * est)))

    kernel = functools.partial(_gemm_bn_kernel, apply_relu=relu, skip_mode=skip_mode)
    out = pl.pallas_call(
        kernel,
        out_shape=jax.ShapeDtypeStruct((Mp, Np), out_dtype),
        grid=(Mp // tm, Np // tn, Kp // tk),
        in_specs=in_specs,
        out_specs=pl.BlockSpec((tm, tn), lambda i, j, k: (i, j)),
        scratch_shapes=[pltpu.VMEM((tm, tn), jnp.float32)],
        compiler_params=pltpu.CompilerParams(
            dimension_semantics=("parallel", "parallel", "arbitrary"),
            vmem_limit_bytes=vmem_limit,
        ),
    )(*inputs)
    return out[:M, :N]


# ----------------------------------------------------------------------------
# Glue: im2col (bf16), weight reshape, BN folding
# ----------------------------------------------------------------------------
def im2col(x_nhwc, kh, kw, stride, pad):
    N, H, W, C = x_nhwc.shape
    xp = jnp.pad(x_nhwc, ((0, 0), (pad, pad), (pad, pad), (0, 0)))
    Ho = (H + 2 * pad - kh) // stride + 1
    Wo = (W + 2 * pad - kw) // stride + 1
    cols = []
    for i in range(kh):
        for j in range(kw):
            cols.append(xp[:, i:i + stride * Ho:stride, j:j + stride * Wo:stride, :])
    patches = jnp.stack(cols, axis=3)                       # (N, Ho, Wo, kh*kw, C)
    return patches.reshape(N * Ho * Wo, kh * kw * C), Ho, Wo


def conv_weight_to_gemm(w_oihw):
    # PyTorch OIHW -> (KH*KW*Cin, Cout), matching the im2col patch ordering (kh, kw, c)
    cout = w_oihw.shape[0]
    return jnp.transpose(w_oihw, (2, 3, 1, 0)).reshape(-1, cout)


def fold_bn(bn):
    gamma, beta, mean, var = bn
    scale = gamma * jax.lax.rsqrt(var + EPS)
    return scale, beta - mean * scale


# ----------------------------------------------------------------------------
# ResidualBlock forward (NCHW in / NCHW out, matching PyTorch)
# ----------------------------------------------------------------------------
def residual_block_forward(x_nchw, params, stride):
    in_c = x_nchw.shape[1]
    out_c = params["w1"].shape[0]
    has_skip = (stride != 1) or (in_c != out_c)

    # NCHW -> NHWC; activations carried as bf16 GEMM operands (f32 accumulation in-kernel).
    x = jnp.transpose(x_nchw, (0, 2, 3, 1)).astype(jnp.bfloat16)
    N, H, W, Cin = x.shape

    # conv1 (3x3, stride, pad=1) + bn1 + relu -> bf16 intermediate
    p1, Ho, Wo = im2col(x, 3, 3, stride, 1)
    s1, b1 = fold_bn(params["bn1"])
    y1 = fused_gemm_bn(p1, conv_weight_to_gemm(params["w1"]), s1, b1,
                       relu=True, out_dtype=jnp.bfloat16)
    y1_img = y1.reshape(N, Ho, Wo, out_c)

    # conv2 (3x3, stride 1, pad=1) + bn2 + skip + relu : one fused pallas_call
    p2, _, _ = im2col(y1_img, 3, 3, 1, 1)
    s2, b2 = fold_bn(params["bn2"])

    if has_skip:
        # 1x1 conv with stride s == strided spatial subsample; fused in-kernel as
        # a second small GEMM in the epilogue (no separate call / HBM round-trip).
        xs = x[:, ::stride, ::stride, :].reshape(N * Ho * Wo, Cin)
        s3, b3 = fold_bn(params["bn3"])
        skip = (xs, conv_weight_to_gemm(params["w3"]), s3, b3)
        y2 = fused_gemm_bn(p2, conv_weight_to_gemm(params["w2"]), s2, b2,
                           skip=skip, relu=True, out_dtype=jnp.float32)
    else:
        res = x.reshape(N * H * W, Cin)
        y2 = fused_gemm_bn(p2, conv_weight_to_gemm(params["w2"]), s2, b2,
                           residual=res, relu=True, out_dtype=jnp.float32)

    out = y2.reshape(N, Ho, Wo, out_c)
    return jnp.transpose(out, (0, 3, 1, 2))                 # NHWC -> NCHW


# ----------------------------------------------------------------------------
# Pure-JAX reference. conv_dtype=bfloat16 mimics the kernel's bf16 GEMM operands
# (f32 accumulation) for a tight numeric check; float32 matches the PyTorch module.
# ----------------------------------------------------------------------------
def reference_forward(x, params, stride, conv_dtype=jnp.float32):
    def conv(xx, w, s, pad):
        return jax.lax.conv_general_dilated(
            xx.astype(conv_dtype), w.astype(conv_dtype), (s, s),
            [(pad, pad), (pad, pad)],
            dimension_numbers=("NCHW", "OIHW", "NCHW"),
            preferred_element_type=jnp.float32,
            precision=jax.lax.Precision.HIGHEST)

    def bn(xx, p):
        g, b, m, v = p
        return (g[None, :, None, None] * (xx - m[None, :, None, None])
                * jax.lax.rsqrt(v[None, :, None, None] + EPS)
                + b[None, :, None, None])

    in_c = x.shape[1]
    out_c = params["w1"].shape[0]
    has_skip = (stride != 1) or (in_c != out_c)

    out = jax.nn.relu(bn(conv(x, params["w1"], stride, 1), params["bn1"]))
    out = bn(conv(out, params["w2"], 1, 1), params["bn2"])
    if has_skip:
        res = bn(conv(x, params["w3"], stride, 0), params["bn3"])
    else:
        res = x.astype(conv_dtype).astype(jnp.float32)
    return jax.nn.relu(out + res)


# ----------------------------------------------------------------------------
def make_params(key, in_c, out_c, has_skip):
    ks = jax.random.split(key, 16)

    def bn_params(k0, k1, k2, k3, c):
        return (jax.random.uniform(k0, (c,), jnp.float32, 0.5, 1.5),   # gamma
                0.1 * jax.random.normal(k1, (c,), jnp.float32),        # beta
                0.1 * jax.random.normal(k2, (c,), jnp.float32),        # running_mean
                jax.random.uniform(k3, (c,), jnp.float32, 0.5, 1.5))   # running_var

    params = {
        "w1": 0.2 * jax.random.normal(ks[0], (out_c, in_c, 3, 3), jnp.float32),
        "bn1": bn_params(ks[1], ks[2], ks[3], ks[4], out_c),
        "w2": 0.2 * jax.random.normal(ks[5], (out_c, out_c, 3, 3), jnp.float32),
        "bn2": bn_params(ks[6], ks[7], ks[8], ks[9], out_c),
    }
    if has_skip:
        params["w3"] = 0.2 * jax.random.normal(ks[10], (out_c, in_c, 1, 1), jnp.float32)
        params["bn3"] = bn_params(ks[11], ks[12], ks[13], ks[14], out_c)
    return params


if __name__ == "__main__":
    key = jax.random.PRNGKey(0)
    k_x, k_p = jax.random.split(key)

    batch, in_c, out_c, hw, stride = 2, 4, 16, 16, 2
    batch, in_c, out_c, hw, stride = 2, 4, 8, 16, 2
    has_skip = (stride != 1) or (in_c != out_c)

    x = jax.random.normal(k_x, (batch, in_c, hw, hw), jnp.float32)
    params = make_params(k_p, in_c, out_c, has_skip)

    out = jax.block_until_ready(residual_block_forward(x, params, stride))

    ref_bf16 = jax.block_until_ready(
        reference_forward(x, params, stride, conv_dtype=jnp.bfloat16))
    ref_f32 = jax.block_until_ready(
        reference_forward(x, params, stride, conv_dtype=jnp.float32))

    assert out.shape == ref_f32.shape == (batch, out_c, hw // stride, hw // stride)
    # tight check vs. a reference that also uses bf16 conv operands (f32 accumulate)
    np.testing.assert_allclose(np.asarray(out), np.asarray(ref_bf16), rtol=5e-3, atol=5e-3)
    # loose check vs. exact f32 module semantics (slack is the bf16-operand quantization)
    np.testing.assert_allclose(np.asarray(out), np.asarray(ref_f32), rtol=5e-2, atol=5e-2)

    print("KERNEL_OK")
</pallas_src>

<mosaic_0001>
module attributes {stable_mosaic.version = 11 : i64} {
  func.func @_gemm_bn_kernel(%arg0: i32, %arg1: i32, %arg2: i32, %arg3: memref<128x128xbf16, #tpu.memory_space<vmem>>, %arg4: memref<128x128xbf16, #tpu.memory_space<vmem>>, %arg5: memref<1x128xf32, #tpu.memory_space<vmem>>, %arg6: memref<1x128xf32, #tpu.memory_space<vmem>>, %arg7: memref<128x128xbf16, #tpu.memory_space<vmem>>, %arg8: memref<128x128xf32, #tpu.memory_space<vmem>>) attributes {dimension_semantics = [#tpu.dimension_semantics<parallel>, #tpu.dimension_semantics<parallel>, #tpu.dimension_semantics<arbitrary>], iteration_bounds = array<i64: 1, 1, 1>, scalar_prefetch = 0 : i64, scratch_operands = 1 : i64, tpu.core_type = #tpu.core_type<tc>, window_params = [{transform_indices = @transform_0, window_bounds = array<i64: 128, 128>}, {transform_indices = @transform_1, window_bounds = array<i64: 128, 128>}, {transform_indices = @transform_2, window_bounds = array<i64: 1, 128>}, {transform_indices = @transform_3, window_bounds = array<i64: 1, 128>}, {transform_indices = @transform_4, window_bounds = array<i64: 128, 128>}]} {
    %c0_i32 = arith.constant 0 : i32
    %0 = arith.cmpi eq, %arg2, %c0_i32 : i32
    %1 = arith.extui %0 : i1 to i32
    %c0_i32_0 = arith.constant 0 : i32
    %2 = arith.cmpi ne, %1, %c0_i32_0 : i32
    scf.if %2 {
      %cst_10 = arith.constant 0.000000e+00 : f32
      %12 = vector.broadcast %cst_10 : f32 to vector<128x128xf32>
      %c0_11 = arith.constant 0 : index
      %c0_12 = arith.constant 0 : index
      %13 = vector.load %arg8[%c0_11, %c0_12] : memref<128x128xf32, #tpu.memory_space<vmem>>, vector<128x128xf32>
      tpu.vector_store %arg8[%c0_11, %c0_12], %12 {strides = array<i32>} : memref<128x128xf32, #tpu.memory_space<vmem>>, vector<128x128xf32>,
    } else {
    }
    %c0 = arith.constant 0 : index
    %c0_1 = arith.constant 0 : index
    %3 = vector.load %arg8[%c0, %c0_1] : memref<128x128xf32, #tpu.memory_space<vmem>>, vector<128x128xf32>
    %c0_2 = arith.constant 0 : index
    %c0_3 = arith.constant 0 : index
    %4 = vector.load %arg3[%c0_2, %c0_3] : memref<128x128xbf16, #tpu.memory_space<vmem>>, vector<128x128xbf16>
    %c0_4 = arith.constant 0 : index
    %c0_5 = arith.constant 0 : index
    %5 = vector.load %arg4[%c0_4, %c0_5] : memref<128x128xbf16, #tpu.memory_space<vmem>>, vector<128x128xbf16>
    %cst = arith.constant dense<0.000000e+00> : vector<128x128xf32>
    %6 = tpu.matmul %4, %5, %cst {dimension_numbers = #tpu.dot_dimension_numbers<[1], [0], [0], [1], [0, 0, 1, 1], [], []>} : vector<128x128xbf16>, vector<128x128xbf16>, vector<128x128xf32> -> vector<128x128xf32>
    %7 = arith.addf %3, %6 : vector<128x128xf32>
    %c0_6 = arith.constant 0 : index
    %c0_7 = arith.constant 0 : index
    %8 = vector.load %arg8[%c0_6, %c0_7] : memref<128x128xf32, #tpu.memory_space<vmem>>, vector<128x128xf32>
    tpu.vector_store %arg8[%c0_6, %c0_7], %7 {strides = array<i32>} : memref<128x128xf32, #tpu.memory_space<vmem>>, vector<128x128xf32>,
    %c0_i32_8 = arith.constant 0 : i32
    %9 = arith.cmpi eq, %arg2, %c0_i32_8 : i32
    %10 = arith.extui %9 : i1 to i32
    %c0_i32_9 = arith.constant 0 : i32
    %11 = arith.cmpi ne, %10, %c0_i32_9 : i32
    scf.if %11 {
      %c0_10 = arith.constant 0 : index
      %c0_11 = arith.constant 0 : index
      %12 = vector.load %arg8[%c0_10, %c0_11] : memref<128x128xf32, #tpu.memory_space<vmem>>, vector<128x128xf32>
      %c0_12 = arith.constant 0 : index
      %c0_13 = arith.constant 0 : index
      %13 = vector.load %arg5[%c0_12, %c0_13] : memref<1x128xf32, #tpu.memory_space<vmem>>, vector<1x128xf32>
      %14 = vector.broadcast %13 : vector<1x128xf32> to vector<128x128xf32>
      %15 = arith.mulf %12, %14 : vector<128x128xf32>
      %c0_14 = arith.constant 0 : index
      %c0_15 = arith.constant 0 : index
      %16 = vector.load %arg6[%c0_14, %c0_15] : memref<1x128xf32, #tpu.memory_space<vmem>>, vector<1x128xf32>
      %17 = vector.broadcast %16 : vector<1x128xf32> to vector<128x128xf32>
      %18 = arith.addf %15, %17 : vector<128x128xf32>
      %cst_16 = arith.constant 0.000000e+00 : f32
      %19 = vector.broadcast %cst_16 : f32 to vector<128x128xf32>
      %20 = arith.maximumf %18, %19 : vector<128x128xf32>
      %21 = arith.truncf %20 : vector<128x128xf32> to vector<128x128xbf16>
      %c0_17 = arith.constant 0 : index
      %c0_18 = arith.constant 0 : index
      %22 = vector.load %arg7[%c0_17, %c0_18] : memref<128x128xbf16, #tpu.memory_space<vmem>>, vector<128x128xbf16>
      tpu.vector_store %arg7[%c0_17, %c0_18], %21 {strides = array<i32>} : memref<128x128xbf16, #tpu.memory_space<vmem>>, vector<128x128xbf16>,
    } else {
    }
    return
  }
  func.func @transform_0(%arg0: i32, %arg1: i32, %arg2: i32) -> (i32, i32) {
    %c0_i32 = arith.constant 0 : i32
    return %arg0, %arg2 : i32, i32
  }
  func.func @transform_1(%arg0: i32, %arg1: i32, %arg2: i32) -> (i32, i32) {
    %c0_i32 = arith.constant 0 : i32
    return %arg2, %arg1 : i32, i32
  }
  func.func @transform_2(%arg0: i32, %arg1: i32, %arg2: i32) -> (i32, i32) {
    %c0_i32 = arith.constant 0 : i32
    %c0_i32_0 = arith.constant 0 : i32
    return %c0_i32, %arg1 : i32, i32
  }
  func.func @transform_3(%arg0: i32, %arg1: i32, %arg2: i32) -> (i32, i32) {
    %c0_i32 = arith.constant 0 : i32
    %c0_i32_0 = arith.constant 0 : i32
    return %c0_i32, %arg1 : i32, i32
  }
  func.func @transform_4(%arg0: i32, %arg1: i32, %arg2: i32) -> (i32, i32) {
    %c0_i32 = arith.constant 0 : i32
    return %arg0, %arg1 : i32, i32
  }
}

</mosaic_0001>

<llo_original>
// kernel: tpu_custom_call.1
$region0: #{tpu_custom_call.1}
  #allocation0 [shape = 'u32[]', space=smem, size = 0x4, offset = 0x4, fixed_abs, tag = 'smem constant byte address 0x4 - core index']
  #allocation1 [shape = 'u32[72,128]{1,0:T(1,128)}', space=vmem, size = 0x9000, scoped, tag = 'internal scratch']
  #allocation2 [shape = 'f32[128,128]{1,0:T(8,128)}', space=vmem, size = 0x10000, scoped, tag = 'scratch operand']
  %s0 = inlined_call_operand.hbm [shape: bf16[128,128], index: 0, kind: input, shape index: {}]
  %s1 = inlined_call_operand.hbm [shape: bf16[128,128], index: 1, kind: input, shape index: {}]
  %s2 = inlined_call_operand.vmem [shape: f32[1,128], index: 2, kind: input, shape index: {}]
  %s3 = inlined_call_operand.vmem [shape: f32[1,128], index: 3, kind: input, shape index: {}]
  %s4 = inlined_call_operand.hbm [shape: bf16[128,128], index: 4, kind: output, shape index: {}]
  %s5 = sld [smem:[#allocation0]]
  $region42: #{tpu_custom_call.1} parent=0
    _
  %s7 = ssub.s32 1, %s5
  %s8 = scalar_select 0, %s7, %s5
  $region1: #{tpu_custom_call.1} parent=0
    #allocation3 [shape = 'u8[32768]{0}', space=vmem, size = 0x8000, scoped, tag = 'input window, operand 0, single buffered']
    #allocation4 [shape = 's32[1]{0}', space=sflag, size = 0x4, scoped, tag = 'scoped memory for tpu_custom_call.1']
    #allocation5 [shape = 's32[1]{0}', space=sflag, size = 0x4, scoped, tag = 'scoped memory for tpu_custom_call.1']
    #allocation6 [shape = 'u8[32768]{0}', space=vmem, size = 0x8000, scoped, tag = 'input window, operand 1, single buffered']
    #allocation7 [shape = 's32[1]{0}', space=sflag, size = 0x4, scoped, tag = 'scoped memory for tpu_custom_call.1']
    #allocation8 [shape = 'u8[32768]{0}', space=vmem, size = 0x8000, scoped, tag = 'output window, operand 0, single buffered']
    %9 = vsyncpa [#allocation4], 0
    %10 = vsyncpa [#allocation7], 0
    %11 = vsyncpa [#allocation5], 0
    // Predicated region
    $region2: #{tpu_custom_call.1} parent=1 // pred_check
      _
    $region3: #{tpu_custom_call.1} parent=1 // pred_check_branch
      %13 = sbr.rel (0) target = $region5
    $region4: #{tpu_custom_call.1} parent=1 // pred_region
      %15 = vsyncadd [#allocation4], 0
      %s16 = sshll.u32 %s0, 4
      %s17 = int_to_ptr.hbm [resolvable:$true] %s16
      %s18 = sshll.u32 [#allocation3], 4
      %s19 = int_to_ptr.vmem [resolvable:$true] %s18
      %24 = dma.hbm_to_vmem [thread:$0]  %s17, 1024, %s19, [#allocation4], 64, 64, 4
    $region5: #{tpu_custom_call.1} parent=1 // pred_fallthru
      _
    // Predicated region
    $region6: #{tpu_custom_call.1} parent=1 // pred_check
      _
    $region7: #{tpu_custom_call.1} parent=1 // pred_check_branch
      %26 = sbr.rel (0) target = $region9
    $region8: #{tpu_custom_call.1} parent=1 // pred_region
      %28 = vsyncadd [#allocation7], 0
      %s29 = sshll.u32 %s1, 4
      %s30 = int_to_ptr.hbm [resolvable:$true] %s29
      %s31 = sshll.u32 [#allocation6], 4
      %s32 = int_to_ptr.vmem [resolvable:$true] %s31
      %37 = dma.hbm_to_vmem [thread:$0]  %s30, 1024, %s32, [#allocation7], 64, 64, 4
    $region9: #{tpu_custom_call.1} parent=1 // pred_fallthru
      _
    // Predicated region
    $region10: #{tpu_custom_call.1} parent=1 // pred_check
      _
    $region11: #{tpu_custom_call.1} parent=1 // pred_check_branch
      %39 = sbr.rel (0) target = $region13
    $region12: #{tpu_custom_call.1} parent=1 // pred_region
      _
    $region13: #{tpu_custom_call.1} parent=1 // pred_fallthru
      _
    // Predicated region
    $region14: #{tpu_custom_call.1} parent=1 // pred_check
      _
    $region15: #{tpu_custom_call.1} parent=1 // pred_check_branch
      %41 = sbr.rel (0) target = $region17
    $region16: #{tpu_custom_call.1} parent=1 // pred_region
      _
    $region17: #{tpu_custom_call.1} parent=1 // pred_fallthru
      _
    // Predicated region
    $region18: #{tpu_custom_call.1} parent=1 // pred_check
      _
    $region19: #{tpu_custom_call.1} parent=1 // pred_check_branch
      %43 = sbr.rel (0) target = $region21
    $region20: #{tpu_custom_call.1} parent=1 // pred_region
      %45 = dma.done [#allocation4], 1024
    $region21: #{tpu_custom_call.1} parent=1 // pred_fallthru
      _
    // Predicated region
    $region22: #{tpu_custom_call.1} parent=1 // pred_check
      _
    $region23: #{tpu_custom_call.1} parent=1 // pred_check_branch
      %47 = sbr.rel (0) target = $region25
    $region24: #{tpu_custom_call.1} parent=1 // pred_region
      %49 = dma.done [#allocation7], 1024
    $region25: #{tpu_custom_call.1} parent=1 // pred_fallthru
      _
    %p50 = scmp.eq.s32.totalorder 0, 0
    // Predicated region
    $region26: #{tpu_custom_call.1} parent=1 // pred_check
      %p51 = pneg %p50
    $region27: #{tpu_custom_call.1} parent=1 // pred_check_branch
      %53 = sbr.rel (%p51) target = $region29
    $region28: #{tpu_custom_call.1} parent=1 // pred_region
      %54 = vst [vmem:[#allocation2] sm:$0xff] 0.0
      %55 = vst [vmem:[#allocation2 + $0x8] sm:$0xff] 0.0
      %56 = vst [vmem:[#allocation2 + $0x10] sm:$0xff] 0.0
      %57 = vst [vmem:[#allocation2 + $0x18] sm:$0xff] 0.0
      %58 = vst [vmem:[#allocation2 + $0x20] sm:$0xff] 0.0
      %59 = vst [vmem:[#allocation2 + $0x28] sm:$0xff] 0.0
      %60 = vst [vmem:[#allocation2 + $0x30] sm:$0xff] 0.0
      %61 = vst [vmem:[#allocation2 + $0x38] sm:$0xff] 0.0
      %62 = vst [vmem:[#allocation2 + $0x40] sm:$0xff] 0.0
      %63 = vst [vmem:[#allocation2 + $0x48] sm:$0xff] 0.0
      %64 = vst [vmem:[#allocation2 + $0x50] sm:$0xff] 0.0
      %65 = vst [vmem:[#allocation2 + $0x58] sm:$0xff] 0.0
      %66 = vst [vmem:[#allocation2 + $0x60] sm:$0xff] 0.0
      %67 = vst [vmem:[#allocation2 + $0x68] sm:$0xff] 0.0
      %68 = vst [vmem:[#allocation2 + $0x70] sm:$0xff] 0.0
      %69 = vst [vmem:[#allocation2 + $0x78] sm:$0xff] 0.0
    $region29: #{tpu_custom_call.1} parent=1 // pred_fallthru
      _
    %v70 = vld [vmem:[#allocation2] sm:$0xff]
    %v71 = vld [vmem:[#allocation2 + $0x8] sm:$0xff]
    %v72 = vld [vmem:[#allocation2 + $0x10] sm:$0xff]
    %v73 = vld [vmem:[#allocation2 + $0x18] sm:$0xff]
    %v74 = vld [vmem:[#allocation2 + $0x20] sm:$0xff]
    %v75 = vld [vmem:[#allocation2 + $0x28] sm:$0xff]
    %v76 = vld [vmem:[#allocation2 + $0x30] sm:$0xff]
    %v77 = vld [vmem:[#allocation2 + $0x38] sm:$0xff]
    %v78 = vld [vmem:[#allocation2 + $0x40] sm:$0xff]
    %v79 = vld [vmem:[#allocation2 + $0x48] sm:$0xff]
    %v80 = vld [vmem:[#allocation2 + $0x50] sm:$0xff]
    %v81 = vld [vmem:[#allocation2 + $0x58] sm:$0xff]
    %v82 = vld [vmem:[#allocation2 + $0x60] sm:$0xff]
    %v83 = vld [vmem:[#allocation2 + $0x68] sm:$0xff]
    %v84 = vld [vmem:[#allocation2 + $0x70] sm:$0xff]
    %v85 = vld [vmem:[#allocation2 + $0x78] sm:$0xff]
    %v86 = vld [vmem:[#allocation3] sm:$0xf]
    %v87 = vld [vmem:[#allocation3 + $0x4] sm:$0xf]
    %v88 = vld [vmem:[#allocation3 + $0x8] sm:$0xf]
    %v89 = vld [vmem:[#allocation3 + $0xc] sm:$0xf]
    %v90 = vld [vmem:[#allocation3 + $0x10] sm:$0xf]
    %v91 = vld [vmem:[#allocation3 + $0x14] sm:$0xf]
    %v92 = vld [vmem:[#allocation3 + $0x18] sm:$0xf]
    %v93 = vld [vmem:[#allocation3 + $0x1c] sm:$0xf]
    %v94 = vld [vmem:[#allocation3 + $0x20] sm:$0xf]
    %v95 = vld [vmem:[#allocation3 + $0x24] sm:$0xf]
    %v96 = vld [vmem:[#allocation3 + $0x28] sm:$0xf]
    %v97 = vld [vmem:[#allocation3 + $0x2c] sm:$0xf]
    %v98 = vld [vmem:[#allocation3 + $0x30] sm:$0xf]
    %v99 = vld [vmem:[#allocation3 + $0x34] sm:$0xf]
    %v100 = vld [vmem:[#allocation3 + $0x38] sm:$0xf]
    %v101 = vld [vmem:[#allocation3 + $0x3c] sm:$0xf]
    %v102 = vld [vmem:[#allocation6] sm:$0xf]
    %v103 = vld [vmem:[#allocation6 + $0x4] sm:$0xf]
    %v104 = vld [vmem:[#allocation6 + $0x8] sm:$0xf]
    %v105 = vld [vmem:[#allocation6 + $0xc] sm:$0xf]
    %v106 = vld [vmem:[#allocation6 + $0x10] sm:$0xf]
    %v107 = vld [vmem:[#allocation6 + $0x14] sm:$0xf]
    %v108 = vld [vmem:[#allocation6 + $0x18] sm:$0xf]
    %v109 = vld [vmem:[#allocation6 + $0x1c] sm:$0xf]
    %v110 = vld [vmem:[#allocation6 + $0x20] sm:$0xf]
    %v111 = vld [vmem:[#allocation6 + $0x24] sm:$0xf]
    %v112 = vld [vmem:[#allocation6 + $0x28] sm:$0xf]
    %v113 = vld [vmem:[#allocation6 + $0x2c] sm:$0xf]
    %v114 = vld [vmem:[#allocation6 + $0x30] sm:$0xf]
    %v115 = vld [vmem:[#allocation6 + $0x34] sm:$0xf]
    %v116 = vld [vmem:[#allocation6 + $0x38] sm:$0xf]
    %v117 = vld [vmem:[#allocation6 + $0x3c] sm:$0xf]
    %v134 = vunpack.c.l.b16 %v86
    %v135 = vunpack.c.l.b16 %v87
    %v136 = vunpack.c.l.b16 %v88
    %v137 = vunpack.c.l.b16 %v89
    %v138 = vunpack.c.l.b16 %v90
    %v139 = vunpack.c.l.b16 %v91
    %v140 = vunpack.c.l.b16 %v92
    %v141 = vunpack.c.l.b16 %v93
    %v142 = vunpack.c.l.b16 %v94
    %v143 = vunpack.c.l.b16 %v95
    %v144 = vunpack.c.l.b16 %v96
    %v145 = vunpack.c.l.b16 %v97
    %v146 = vunpack.c.l.b16 %v98
    %v147 = vunpack.c.l.b16 %v99
    %v148 = vunpack.c.l.b16 %v100
    %v149 = vunpack.c.l.b16 %v101
    %v150 = vpack.c.b16 %v135, %v134
    %v151 = vpack.c.b16 %v137, %v136
    %v152 = vpack.c.b16 %v139, %v138
    %v153 = vpack.c.b16 %v141, %v140
    %v154 = vpack.c.b16 %v143, %v142
    %v155 = vpack.c.b16 %v145, %v144
    %v156 = vpack.c.b16 %v147, %v146
    %v157 = vpack.c.b16 %v149, %v148
    %v182 = vunpack.c.l.b16 %v102
    %v183 = vunpack.c.l.b16 %v103
    %v184 = vunpack.c.l.b16 %v104
    %v185 = vunpack.c.l.b16 %v105
    %v186 = vunpack.c.l.b16 %v106
    %v187 = vunpack.c.l.b16 %v107
    %v188 = vunpack.c.l.b16 %v108
    %v189 = vunpack.c.l.b16 %v109
    %v190 = vunpack.c.l.b16 %v110
    %v191 = vunpack.c.l.b16 %v111
    %v192 = vunpack.c.l.b16 %v112
    %v193 = vunpack.c.l.b16 %v113
    %v194 = vunpack.c.l.b16 %v114
    %v195 = vunpack.c.l.b16 %v115
    %v196 = vunpack.c.l.b16 %v116
    %v197 = vunpack.c.l.b16 %v117
    %v198 = vpack.c.b16 %v183, %v182
    %v199 = vpack.c.b16 %v185, %v184
    %v200 = vpack.c.b16 %v187, %v186
    %v201 = vpack.c.b16 %v189, %v188
    %v202 = vpack.c.b16 %v191, %v190
    %v203 = vpack.c.b16 %v193, %v192
    %v204 = vpack.c.b16 %v195, %v194
    %v205 = vpack.c.b16 %v197, %v196
    %214 = vmatpush.bf16.msra.mxu0 %v205
    %215 = vmatpush.bf16.msra.mxu0 %v204
    %216 = vmatpush.bf16.msra.mxu0 %v203
    %217 = vmatpush.bf16.msra.mxu0 %v202
    %218 = vmatpush.bf16.msra.mxu0 %v201
    %219 = vmatpush.bf16.msra.mxu0 %v200
    %220 = vmatpush.bf16.msra.mxu0 %v199
    %221 = vmatpush.bf16.msra.mxu0 %v198
    %222 = vmatmul.bf16.gmra.mxu0 %v150
    %v223 = vpop.f32.mrf.mxu0
    %v224 = vadd.f32 0.0, %v223
    %v225 = vpop.f32.mrf.mxu0
    %v226 = vadd.f32 0.0, %v225
    %227 = vmatmul.bf16.gmra.mxu0 %v151
    %v228 = vpop.f32.mrf.mxu0
    %v229 = vadd.f32 0.0, %v228
    %v230 = vpop.f32.mrf.mxu0
    %v231 = vadd.f32 0.0, %v230
    %232 = vmatmul.bf16.gmra.mxu0 %v152
    %v233 = vpop.f32.mrf.mxu0
    %v234 = vadd.f32 0.0, %v233
    %v235 = vpop.f32.mrf.mxu0
    %v236 = vadd.f32 0.0, %v235
    %237 = vmatmul.bf16.gmra.mxu0 %v153
    %v238 = vpop.f32.mrf.mxu0
    %v239 = vadd.f32 0.0, %v238
    %v240 = vpop.f32.mrf.mxu0
    %v241 = vadd.f32 0.0, %v240
    %242 = vmatmul.bf16.gmra.mxu0 %v154
    %v243 = vpop.f32.mrf.mxu0
    %v244 = vadd.f32 0.0, %v243
    %v245 = vpop.f32.mrf.mxu0
    %v246 = vadd.f32 0.0, %v245
    %247 = vmatmul.bf16.gmra.mxu0 %v155
    %v248 = vpop.f32.mrf.mxu0
    %v249 = vadd.f32 0.0, %v248
    %v250 = vpop.f32.mrf.mxu0
    %v251 = vadd.f32 0.0, %v250
    %252 = vmatmul.bf16.gmra.mxu0 %v156
    %v253 = vpop.f32.mrf.mxu0
    %v254 = vadd.f32 0.0, %v253
    %v255 = vpop.f32.mrf.mxu0
    %v256 = vadd.f32 0.0, %v255
    %257 = vmatmul.bf16.gmra.mxu0 %v157
    %v258 = vpop.f32.mrf.mxu0
    %v259 = vadd.f32 0.0, %v258
    %v260 = vpop.f32.mrf.mxu0
    %v261 = vadd.f32 0.0, %v260
    %262 = vdwg.mxu0
    %v263 = vadd.f32 %v70, %v224
    %v264 = vadd.f32 %v71, %v226
    %v265 = vadd.f32 %v72, %v229
    %v266 = vadd.f32 %v73, %v231
    %v267 = vadd.f32 %v74, %v234
    %v268 = vadd.f32 %v75, %v236
    %v269 = vadd.f32 %v76, %v239
    %v270 = vadd.f32 %v77, %v241
    %v271 = vadd.f32 %v78, %v244
    %v272 = vadd.f32 %v79, %v246
    %v273 = vadd.f32 %v80, %v249
    %v274 = vadd.f32 %v81, %v251
    %v275 = vadd.f32 %v82, %v254
    %v276 = vadd.f32 %v83, %v256
    %v277 = vadd.f32 %v84, %v259
    %v278 = vadd.f32 %v85, %v261
    %279 = vst [vmem:[#allocation2] sm:$0xff] %v263
    %280 = vst [vmem:[#allocation2 + $0x8] sm:$0xff] %v264
    %281 = vst [vmem:[#allocation2 + $0x10] sm:$0xff] %v265
    %282 = vst [vmem:[#allocation2 + $0x18] sm:$0xff] %v266
    %283 = vst [vmem:[#allocation2 + $0x20] sm:$0xff] %v267
    %284 = vst [vmem:[#allocation2 + $0x28] sm:$0xff] %v268
    %285 = vst [vmem:[#allocation2 + $0x30] sm:$0xff] %v269
    %286 = vst [vmem:[#allocation2 + $0x38] sm:$0xff] %v270
    %287 = vst [vmem:[#allocation2 + $0x40] sm:$0xff] %v271
    %288 = vst [vmem:[#allocation2 + $0x48] sm:$0xff] %v272
    %289 = vst [vmem:[#allocation2 + $0x50] sm:$0xff] %v273
    %290 = vst [vmem:[#allocation2 + $0x58] sm:$0xff] %v274
    %291 = vst [vmem:[#allocation2 + $0x60] sm:$0xff] %v275
    %292 = vst [vmem:[#allocation2 + $0x68] sm:$0xff] %v276
    %293 = vst [vmem:[#allocation2 + $0x70] sm:$0xff] %v277
    %294 = vst [vmem:[#allocation2 + $0x78] sm:$0xff] %v278
    // Predicated region
    $region30: #{tpu_custom_call.1} parent=1 // pred_check
      %p295 = pneg %p50
    $region31: #{tpu_custom_call.1} parent=1 // pred_check_branch
      %297 = sbr.rel (%p295) target = $region33
    $region32: #{tpu_custom_call.1} parent=1 // pred_region
      %v298 = vld [vmem:[#allocation2] sm:$0xff]
      %v299 = vld [vmem:[#allocation2 + $0x8] sm:$0xff]
      %v300 = vld [vmem:[#allocation2 + $0x10] sm:$0xff]
      %v301 = vld [vmem:[#allocation2 + $0x18] sm:$0xff]
      %v302 = vld [vmem:[#allocation2 + $0x20] sm:$0xff]
      %v303 = vld [vmem:[#allocation2 + $0x28] sm:$0xff]
      %v304 = vld [vmem:[#allocation2 + $0x30] sm:$0xff]
      %v305 = vld [vmem:[#allocation2 + $0x38] sm:$0xff]
      %v306 = vld [vmem:[#allocation2 + $0x40] sm:$0xff]
      %v307 = vld [vmem:[#allocation2 + $0x48] sm:$0xff]
      %v308 = vld [vmem:[#allocation2 + $0x50] sm:$0xff]
      %v309 = vld [vmem:[#allocation2 + $0x58] sm:$0xff]
      %v310 = vld [vmem:[#allocation2 + $0x60] sm:$0xff]
      %v311 = vld [vmem:[#allocation2 + $0x68] sm:$0xff]
      %v312 = vld [vmem:[#allocation2 + $0x70] sm:$0xff]
      %v313 = vld [vmem:[#allocation2 + $0x78] sm:$0xff]
      %v314 = vld [vmem:[%s2] sm:$0x1]
      %v316 = vperm.slane %v314, 0
      %v318 = vmul.f32 %v298, %v316
      %v319 = vmul.f32 %v299, %v316
      %v320 = vmul.f32 %v300, %v316
      %v321 = vmul.f32 %v301, %v316
      %v322 = vmul.f32 %v302, %v316
      %v323 = vmul.f32 %v303, %v316
      %v324 = vmul.f32 %v304, %v316
      %v325 = vmul.f32 %v305, %v316
      %v326 = vmul.f32 %v306, %v316
      %v327 = vmul.f32 %v307, %v316
      %v328 = vmul.f32 %v308, %v316
      %v329 = vmul.f32 %v309, %v316
      %v330 = vmul.f32 %v310, %v316
      %v331 = vmul.f32 %v311, %v316
      %v332 = vmul.f32 %v312, %v316
      %v333 = vmul.f32 %v313, %v316
      %v334 = vld [vmem:[%s3] sm:$0x1]
      %v336 = vperm.slane %v334, 0
      %v338 = vadd.f32 %v318, %v336
      %v339 = vadd.f32 %v319, %v336
      %v340 = vadd.f32 %v320, %v336
      %v341 = vadd.f32 %v321, %v336
      %v342 = vadd.f32 %v322, %v336
      %v343 = vadd.f32 %v323, %v336
      %v344 = vadd.f32 %v324, %v336
      %v345 = vadd.f32 %v325, %v336
      %v346 = vadd.f32 %v326, %v336
      %v347 = vadd.f32 %v327, %v336
      %v348 = vadd.f32 %v328, %v336
      %v349 = vadd.f32 %v329, %v336
      %v350 = vadd.f32 %v330, %v336
      %v351 = vadd.f32 %v331, %v336
      %v352 = vadd.f32 %v332, %v336
      %v353 = vadd.f32 %v333, %v336
      %v354 = vmax.f32 %v338, 0.0
      %v355 = vmax.f32 %v339, 0.0
      %v356 = vmax.f32 %v340, 0.0
      %v357 = vmax.f32 %v341, 0.0
      %v358 = vmax.f32 %v342, 0.0
      %v359 = vmax.f32 %v343, 0.0
      %v360 = vmax.f32 %v344, 0.0
      %v361 = vmax.f32 %v345, 0.0
      %v362 = vmax.f32 %v346, 0.0
      %v363 = vmax.f32 %v347, 0.0
      %v364 = vmax.f32 %v348, 0.0
      %v365 = vmax.f32 %v349, 0.0
      %v366 = vmax.f32 %v350, 0.0
      %v367 = vmax.f32 %v351, 0.0
      %v368 = vmax.f32 %v352, 0.0
      %v369 = vmax.f32 %v353, 0.0
      %v370 = vpack.c.bf16 %v354, %v354
      %v371 = vpack.c.bf16 %v355, %v355
      %v372 = vpack.c.bf16 %v356, %v356
      %v373 = vpack.c.bf16 %v357, %v357
      %v374 = vpack.c.bf16 %v358, %v358
      %v375 = vpack.c.bf16 %v359, %v359
      %v376 = vpack.c.bf16 %v360, %v360
      %v377 = vpack.c.bf16 %v361, %v361
      %v378 = vpack.c.bf16 %v362, %v362
      %v379 = vpack.c.bf16 %v363, %v363
      %v380 = vpack.c.bf16 %v364, %v364
      %v381 = vpack.c.bf16 %v365, %v365
      %v382 = vpack.c.bf16 %v366, %v366
      %v383 = vpack.c.bf16 %v367, %v367
      %v384 = vpack.c.bf16 %v368, %v368
      %v385 = vpack.c.bf16 %v369, %v369
      %386 = vst [vmem:[#allocation8] sm:$0xf] %v370
      %387 = vst [vmem:[#allocation8 + $0x4] sm:$0xf] %v371
      %388 = vst [vmem:[#allocation8 + $0x8] sm:$0xf] %v372
      %389 = vst [vmem:[#allocation8 + $0xc] sm:$0xf] %v373
      %390 = vst [vmem:[#allocation8 + $0x10] sm:$0xf] %v374
      %391 = vst [vmem:[#allocation8 + $0x14] sm:$0xf] %v375
      %392 = vst [vmem:[#allocation8 + $0x18] sm:$0xf] %v376
      %393 = vst [vmem:[#allocation8 + $0x1c] sm:$0xf] %v377
      %394 = vst [vmem:[#allocation8 + $0x20] sm:$0xf] %v378
      %395 = vst [vmem:[#allocation8 + $0x24] sm:$0xf] %v379
      %396 = vst [vmem:[#allocation8 + $0x28] sm:$0xf] %v380
      %397 = vst [vmem:[#allocation8 + $0x2c] sm:$0xf] %v381
      %398 = vst [vmem:[#allocation8 + $0x30] sm:$0xf] %v382
      %399 = vst [vmem:[#allocation8 + $0x34] sm:$0xf] %v383
      %400 = vst [vmem:[#allocation8 + $0x38] sm:$0xf] %v384
      %401 = vst [vmem:[#allocation8 + $0x3c] sm:$0xf] %v385
    $region33: #{tpu_custom_call.1} parent=1 // pred_fallthru
      _
    // Predicated region
    $region34: #{tpu_custom_call.1} parent=1 // pred_check
      _
    $region35: #{tpu_custom_call.1} parent=1 // pred_check_branch
      %403 = sbr.rel (0) target = $region37
    $region36: #{tpu_custom_call.1} parent=1 // pred_region
      %405 = vsyncadd [#allocation5], 0
      %s406 = sshll.u32 [#allocation8], 4
      %s407 = int_to_ptr.vmem [resolvable:$true] %s406
      %s408 = sshll.u32 %s4, 4
      %s409 = int_to_ptr.hbm [resolvable:$true] %s408
      %414 = dma.vmem_to_hbm [thread:$0]  %s407, 1024, %s409, [#allocation5], 64, 64, 4
    $region37: #{tpu_custom_call.1} parent=1 // pred_fallthru
      _
    // Predicated region
    $region38: #{tpu_custom_call.1} parent=1 // pred_check
      _
    $region39: #{tpu_custom_call.1} parent=1 // pred_check_branch
      %416 = sbr.rel (0) target = $region41
    $region40: #{tpu_custom_call.1} parent=1 // pred_region
      %418 = dma.done [#allocation5], 1024
    $region41: #{tpu_custom_call.1} parent=1 // pred_fallthru
      _
    %419 = vsyncpa [#allocation4], 1
    %420 = vsyncpa [#allocation7], 1
    %421 = vsyncpa [#allocation5], 1

</llo_original>
